<compile_context>
chip_gen: v7x
topology: tpu7x:2x2x1
jax: 0.10.0
libtpu: 0.0.40
codegen_flags: <defaults>
</compile_context>

<pallas_src>
import jax
import jax.numpy as jnp
from jax.experimental import pallas as pl
from jax.experimental.pallas import tpu as pltpu


def _round_up(x, m):
    return (x + m - 1) // m * m


# ----------------------------------------------------------------------------
# Fused kernel: conv3x3+ReLU -> polyphase ConvTranspose2d(3x3,s2,p1,op1)+ReLU
# ----------------------------------------------------------------------------
def _make_decoder_kernel(Wp, Lpad, Lh, compute_dtype):
    """All spatial data is flat with row stride Wp, so every 3x3 tap is a
    contiguous lane slice and both matmuls put the big spatial axis on the
    128-wide lane dimension."""
    tap_offs_1 = tuple(dy * Wp + dx for dy in range(3) for dx in range(3))
    tap_offs_2 = (0, 1, Wp, Wp + 1)

    def kernel(xp_ref, w1_ref, b1_ref, w2_ref, b2_ref, mask_ref, o_ref,
               s1_ref, h_ref, s2_ref):
        Cin = xp_ref.shape[1]
        Cct = h_ref.shape[0]

        x = xp_ref[0]                                   # (Cin, Lx) flat padded

        # ---- stage-1 tap slab: 9 lane-shifted copies of the padded input ----
        for t, off in enumerate(tap_offs_1):
            s1_ref[t * Cin:(t + 1) * Cin, :] = x[:, off:off + Lpad]

        # ---- stage 1: ONE (Cct, 9*Cin) x (9*Cin, Lpad) MXU pass, f32 acc ----
        acc1 = jnp.dot(w1_ref[...], s1_ref[...],
                       preferred_element_type=jnp.float32)
        # bias + ReLU; zero the wrap columns (w >= W) and lanes >= H*Wp so
        # they act as the transposed conv's zero padding.
        h = jnp.maximum(acc1 + b1_ref[...], 0.0) * mask_ref[...]

        # h lives in a persistent VMEM scratch with an explicit zero tail
        # (replaces the old jnp.concatenate copy of the whole intermediate).
        h_ref[:, :Lpad] = h.astype(compute_dtype)
        h_ref[:, Lpad:] = jnp.zeros((Cct, Lh - Lpad), compute_dtype)

        # ---- stage-2 polyphase slab: 4 shifted copies of h ----
        for q, off in enumerate(tap_offs_2):
            s2_ref[q * Cct:(q + 1) * Cct, :] = h_ref[:, off:off + Lpad]

        # ---- stage 2: ONE (4*Cout, 4*Cct) x (4*Cct, Lpad) MXU pass; the 4
        # output phases come out stacked on sublanes -> single dense store ----
        acc2 = jnp.dot(w2_ref[...], s2_ref[...],
                       preferred_element_type=jnp.float32)
        o_ref[0] = jnp.maximum(acc2 + b2_ref[...], 0.0).astype(o_ref.dtype)

    return kernel


# Taps of the spatially flipped 3x3 ConvTranspose kernel used by each output
# phase (py, px).  Entries are (flat tap index t = dy*3+dx of the flipped
# kernel, slab slot q), where slot q corresponds to h offsets (0, 1, Wp, Wp+1).
_PHASE_TAPS = (
    ((4, 0),),                          # phase (0, 0)
    ((3, 0), (5, 1)),                   # phase (0, 1)
    ((1, 0), (7, 2)),                   # phase (1, 0)
    ((0, 0), (2, 1), (6, 2), (8, 3)),   # phase (1, 1)
)


# ----------------------------------------------------------------------------
# Module forward (NCHW in / NCHW out, matching PyTorch)
# ----------------------------------------------------------------------------
def unet_decoder_forward(x_nchw, params, compute_dtype=jnp.bfloat16,
                         out_dtype=None):
    N, Cin, H, W = x_nchw.shape
    Cct = params["conv_b"].shape[0]
    Cout = params["tconv_b"].shape[0]
    out_dtype = x_nchw.dtype if out_dtype is None else out_dtype

    Wp = W + 2                                  # flat row stride (L/R pad)
    L = H * Wp                                  # flat length of one image
    Lpad = _round_up(L, 128)                    # lane-dense (multiple of 128)
    Lh = Lpad + _round_up(Wp + 1, 128)          # h scratch incl. zero tail
    Lx = _round_up(Lpad + 2 * Wp + 2, 128)      # padded-input flat length

    # Pad the image by 1 on every side, flatten, zero-extend to Lx.
    xp = jnp.pad(x_nchw, ((0, 0), (0, 0), (1, 1), (1, 1)))
    xp = xp.reshape(N, Cin, (H + 2) * Wp)
    xp = jnp.pad(xp, ((0, 0), (0, 0), (0, Lx - (H + 2) * Wp)))
    xp = xp.astype(compute_dtype)

    # Conv weight (Cct, Cin, 3, 3) -> (Cct, 9*Cin), column block t = dy*3+dx.
    w1 = jnp.transpose(params["conv_w"], (0, 2, 3, 1)).reshape(Cct, 9 * Cin)
    w1 = w1.astype(compute_dtype)
    b1 = params["conv_b"].reshape(Cct, 1).astype(jnp.float32)

    # ConvTranspose weight (Cct, Cout, 3, 3): flip spatially -> (9, Cout, Cct)
    # taps, then scatter into the block-structured (4*Cout, 4*Cct) matrix.
    w2f = jnp.transpose(jnp.flip(params["tconv_w"], (2, 3)), (2, 3, 1, 0))
    w2f = w2f.reshape(9, Cout, Cct)
    w2big = jnp.zeros((4, Cout, 4, Cct), jnp.float32)
    for p, taps in enumerate(_PHASE_TAPS):
        for t, q in taps:
            w2big = w2big.at[p, :, q, :].set(w2f[t])
    w2big = w2big.reshape(4 * Cout, 4 * Cct).astype(compute_dtype)
    b2 = jnp.tile(params["tconv_b"].reshape(1, Cout, 1), (4, 1, 1))
    b2 = b2.reshape(4 * Cout, 1).astype(jnp.float32)

    # Valid-lane mask: column < W and lane < L (zeros double as stage-2 pad).
    lane = jnp.arange(Lpad)
    mask = ((lane % Wp < W) & (lane < L)).astype(jnp.float32).reshape(1, Lpad)

    out_ph = pl.pallas_call(
        _make_decoder_kernel(Wp, Lpad, Lh, compute_dtype),
        out_shape=jax.ShapeDtypeStruct((N, 4 * Cout, Lpad), out_dtype),
        grid=(N,),
        in_specs=[
            pl.BlockSpec((1, Cin, Lx), lambda n: (n, 0, 0)),
            pl.BlockSpec((Cct, 9 * Cin), lambda n: (0, 0)),
            pl.BlockSpec((Cct, 1), lambda n: (0, 0)),
            pl.BlockSpec((4 * Cout, 4 * Cct), lambda n: (0, 0)),
            pl.BlockSpec((4 * Cout, 1), lambda n: (0, 0)),
            pl.BlockSpec((1, Lpad), lambda n: (0, 0)),
        ],
        out_specs=pl.BlockSpec((1, 4 * Cout, Lpad), lambda n: (n, 0, 0)),
        scratch_shapes=[
            pltpu.VMEM((9 * Cin, Lpad), compute_dtype),   # stage-1 tap slab
            pltpu.VMEM((Cct, Lh), compute_dtype),         # h + zero tail
            pltpu.VMEM((4 * Cct, Lpad), compute_dtype),   # stage-2 phase slab
        ],
        compiler_params=pltpu.CompilerParams(
            dimension_semantics=("parallel",),
            vmem_limit_bytes=48 * 1024 * 1024),
    )(xp, w1, b1, w2big, b2, mask)

    # Depth-to-space (tiny XLA epilogue; kernel stores stay lane-dense):
    # (N, 4*Cout, Lpad) -> (N, py, px, Cout, H, W) -> (N, Cout, 2H, 2W).
    ph = out_ph[:, :, :L].reshape(N, 2, 2, Cout, H, Wp)[..., :W]
    out = jnp.transpose(ph, (0, 3, 4, 1, 5, 2)).reshape(N, Cout, 2 * H, 2 * W)
    return out


# ----------------------------------------------------------------------------
# Pure-JAX reference (lax convs) for a numerical cross-check
# ----------------------------------------------------------------------------
def reference_forward(x_nchw, params):
    dn = ("NCHW", "OIHW", "NCHW")
    hi = jax.lax.Precision.HIGHEST
    h = jax.lax.conv_general_dilated(
        x_nchw, params["conv_w"], (1, 1), ((1, 1), (1, 1)),
        dimension_numbers=dn, precision=hi)
    h = jnp.maximum(h + params["conv_b"][None, :, None, None], 0.0)
    w2f = jnp.transpose(jnp.flip(params["tconv_w"], (2, 3)), (1, 0, 2, 3))
    o = jax.lax.conv_general_dilated(
        h, w2f, (1, 1), ((1, 2), (1, 2)), lhs_dilation=(2, 2),
        dimension_numbers=dn, precision=hi)
    return jnp.maximum(o + params["tconv_b"][None, :, None, None], 0.0)


# ----------------------------------------------------------------------------
def init_params(key, in_channels, in_channels_ct, out_channels):
    k1, k2, k3, k4 = jax.random.split(key, 4)
    bound1 = (1.0 / (in_channels * 9)) ** 0.5
    bound2 = (1.0 / (in_channels_ct * 9)) ** 0.5
    return {
        "conv_w": jax.random.uniform(k1, (in_channels_ct, in_channels, 3, 3),
                                     jnp.float32, -bound1, bound1),
        "conv_b": jax.random.uniform(k2, (in_channels_ct,), jnp.float32,
                                     -bound1, bound1),
        "tconv_w": jax.random.uniform(k3, (in_channels_ct, out_channels, 3, 3),
                                      jnp.float32, -bound2, bound2),
        "tconv_b": jax.random.uniform(k4, (out_channels,), jnp.float32,
                                      -bound2, bound2),
    }


if __name__ == "__main__":
    in_channels, in_channels_ct, out_channels = 4, 8, 4
    N, H, W = 2, 16, 16

    key = jax.random.PRNGKey(0)
    kx, kp = jax.random.split(key)
    x = jax.random.normal(kx, (N, in_channels, H, W), jnp.float32)
    params = init_params(kp, in_channels, in_channels_ct, out_channels)

    ref = jax.block_until_ready(reference_forward(x, params))

    # f32 compute path (tight tolerance)
    out = jax.block_until_ready(
        unet_decoder_forward(x, params, compute_dtype=jnp.float32))
    assert out.shape == (N, out_channels, 2 * H, 2 * W), out.shape
    assert jnp.allclose(out, ref, rtol=1e-3, atol=1e-3), \
        float(jnp.max(jnp.abs(out - ref)))

    # default path: bf16 MXU inputs with f32 accumulation (looser tolerance)
    out_bf16 = jax.block_until_ready(unet_decoder_forward(x, params))
    assert out_bf16.shape == (N, out_channels, 2 * H, 2 * W), out_bf16.shape
    assert jnp.allclose(out_bf16, ref, rtol=3e-2, atol=3e-2), \
        float(jnp.max(jnp.abs(out_bf16 - ref)))

    print("KERNEL_OK")
</pallas_src>

<mosaic_0001>
module attributes {stable_mosaic.version = 11 : i64} {
  func.func @kernel(%arg0: i32, %arg1: memref<1x4x512xf32, #tpu.memory_space<vmem>>, %arg2: memref<8x36xf32, #tpu.memory_space<vmem>>, %arg3: memref<8x1xf32, #tpu.memory_space<vmem>>, %arg4: memref<16x32xf32, #tpu.memory_space<vmem>>, %arg5: memref<16x1xf32, #tpu.memory_space<vmem>>, %arg6: memref<1x384xf32, #tpu.memory_space<vmem>>, %arg7: memref<1x16x384xf32, #tpu.memory_space<vmem>>, %arg8: memref<36x384xf32, #tpu.memory_space<vmem>>, %arg9: memref<8x512xf32, #tpu.memory_space<vmem>>, %arg10: memref<32x384xf32, #tpu.memory_space<vmem>>) attributes {dimension_semantics = [#tpu.dimension_semantics<parallel>], iteration_bounds = array<i64: 2>, scalar_prefetch = 0 : i64, scratch_operands = 3 : i64, tpu.core_type = #tpu.core_type<tc>, window_params = [{transform_indices = @transform_0, window_bounds = array<i64: 1, 4, 512>}, {pipeline_mode = #tpu.pipeline_mode<synchronous>, transform_indices = @transform_1, window_bounds = array<i64: 8, 36>}, {pipeline_mode = #tpu.pipeline_mode<synchronous>, transform_indices = @transform_2, window_bounds = array<i64: 8, 1>}, {pipeline_mode = #tpu.pipeline_mode<synchronous>, transform_indices = @transform_3, window_bounds = array<i64: 16, 32>}, {pipeline_mode = #tpu.pipeline_mode<synchronous>, transform_indices = @transform_4, window_bounds = array<i64: 16, 1>}, {pipeline_mode = #tpu.pipeline_mode<synchronous>, transform_indices = @transform_5, window_bounds = array<i64: 1, 384>}, {transform_indices = @transform_6, window_bounds = array<i64: 1, 16, 384>}]} {
    %c0 = arith.constant 0 : index
    %c0_0 = arith.constant 0 : index
    %c0_1 = arith.constant 0 : index
    %0 = vector.load %arg1[%c0, %c0_0, %c0_1] : memref<1x4x512xf32, #tpu.memory_space<vmem>>, vector<1x4x512xf32>
    %1 = vector.shape_cast %0 : vector<1x4x512xf32> to vector<4x512xf32>
    %2 = vector.extract_strided_slice %1 {offsets = [0, 0], sizes = [4, 384], strides = [1, 1]} : vector<4x512xf32> to vector<4x384xf32>
    %c0_2 = arith.constant 0 : index
    %c0_3 = arith.constant 0 : index
    %3 = vector.load %arg8[%c0_2, %c0_3] : memref<36x384xf32, #tpu.memory_space<vmem>>, vector<4x384xf32>
    tpu.vector_store %arg8[%c0_2, %c0_3], %2 {strides = array<i32>} : memref<36x384xf32, #tpu.memory_space<vmem>>, vector<4x384xf32>,
    %4 = vector.extract_strided_slice %1 {offsets = [0, 1], sizes = [4, 384], strides = [1, 1]} : vector<4x512xf32> to vector<4x384xf32>
    %c4 = arith.constant 4 : index
    %c0_4 = arith.constant 0 : index
    %5 = vector.load %arg8[%c4, %c0_4] : memref<36x384xf32, #tpu.memory_space<vmem>>, vector<4x384xf32>
    tpu.vector_store %arg8[%c4, %c0_4], %4 {strides = array<i32>} : memref<36x384xf32, #tpu.memory_space<vmem>>, vector<4x384xf32>,
    %6 = vector.extract_strided_slice %1 {offsets = [0, 2], sizes = [4, 384], strides = [1, 1]} : vector<4x512xf32> to vector<4x384xf32>
    %c8 = arith.constant 8 : index
    %c0_5 = arith.constant 0 : index
    %7 = vector.load %arg8[%c8, %c0_5] : memref<36x384xf32, #tpu.memory_space<vmem>>, vector<4x384xf32>
    tpu.vector_store %arg8[%c8, %c0_5], %6 {strides = array<i32>} : memref<36x384xf32, #tpu.memory_space<vmem>>, vector<4x384xf32>,
    %8 = vector.extract_strided_slice %1 {offsets = [0, 18], sizes = [4, 384], strides = [1, 1]} : vector<4x512xf32> to vector<4x384xf32>
    %c12 = arith.constant 12 : index
    %c0_6 = arith.constant 0 : index
    %9 = vector.load %arg8[%c12, %c0_6] : memref<36x384xf32, #tpu.memory_space<vmem>>, vector<4x384xf32>
    tpu.vector_store %arg8[%c12, %c0_6], %8 {strides = array<i32>} : memref<36x384xf32, #tpu.memory_space<vmem>>, vector<4x384xf32>,
    %10 = vector.extract_strided_slice %1 {offsets = [0, 19], sizes = [4, 384], strides = [1, 1]} : vector<4x512xf32> to vector<4x384xf32>
    %c16 = arith.constant 16 : index
    %c0_7 = arith.constant 0 : index
    %11 = vector.load %arg8[%c16, %c0_7] : memref<36x384xf32, #tpu.memory_space<vmem>>, vector<4x384xf32>
    tpu.vector_store %arg8[%c16, %c0_7], %10 {strides = array<i32>} : memref<36x384xf32, #tpu.memory_space<vmem>>, vector<4x384xf32>,
    %12 = vector.extract_strided_slice %1 {offsets = [0, 20], sizes = [4, 384], strides = [1, 1]} : vector<4x512xf32> to vector<4x384xf32>
    %c20 = arith.constant 20 : index
    %c0_8 = arith.constant 0 : index
    %13 = vector.load %arg8[%c20, %c0_8] : memref<36x384xf32, #tpu.memory_space<vmem>>, vector<4x384xf32>
    tpu.vector_store %arg8[%c20, %c0_8], %12 {strides = array<i32>} : memref<36x384xf32, #tpu.memory_space<vmem>>, vector<4x384xf32>,
    %14 = vector.extract_strided_slice %1 {offsets = [0, 36], sizes = [4, 384], strides = [1, 1]} : vector<4x512xf32> to vector<4x384xf32>
    %c24 = arith.constant 24 : index
    %c0_9 = arith.constant 0 : index
    %15 = vector.load %arg8[%c24, %c0_9] : memref<36x384xf32, #tpu.memory_space<vmem>>, vector<4x384xf32>
    tpu.vector_store %arg8[%c24, %c0_9], %14 {strides = array<i32>} : memref<36x384xf32, #tpu.memory_space<vmem>>, vector<4x384xf32>,
    %16 = vector.extract_strided_slice %1 {offsets = [0, 37], sizes = [4, 384], strides = [1, 1]} : vector<4x512xf32> to vector<4x384xf32>
    %c28 = arith.constant 28 : index
    %c0_10 = arith.constant 0 : index
    %17 = vector.load %arg8[%c28, %c0_10] : memref<36x384xf32, #tpu.memory_space<vmem>>, vector<4x384xf32>
    tpu.vector_store %arg8[%c28, %c0_10], %16 {strides = array<i32>} : memref<36x384xf32, #tpu.memory_space<vmem>>, vector<4x384xf32>,
    %18 = vector.extract_strided_slice %1 {offsets = [0, 38], sizes = [4, 384], strides = [1, 1]} : vector<4x512xf32> to vector<4x384xf32>
    %c32 = arith.constant 32 : index
    %c0_11 = arith.constant 0 : index
    %19 = vector.load %arg8[%c32, %c0_11] : memref<36x384xf32, #tpu.memory_space<vmem>>, vector<4x384xf32>
    tpu.vector_store %arg8[%c32, %c0_11], %18 {strides = array<i32>} : memref<36x384xf32, #tpu.memory_space<vmem>>, vector<4x384xf32>,
    %c0_12 = arith.constant 0 : index
    %c0_13 = arith.constant 0 : index
    %20 = vector.load %arg2[%c0_12, %c0_13] : memref<8x36xf32, #tpu.memory_space<vmem>>, vector<8x36xf32>
    %c0_14 = arith.constant 0 : index
    %c0_15 = arith.constant 0 : index
    %21 = vector.load %arg8[%c0_14, %c0_15] : memref<36x384xf32, #tpu.memory_space<vmem>>, vector<36x384xf32>
    %cst = arith.constant dense<0.000000e+00> : vector<8x384xf32>
    %22 = tpu.matmul %20, %21, %cst {dimension_numbers = #tpu.dot_dimension_numbers<[1], [0], [0], [1], [0, 0, 1, 1], [], []>} : vector<8x36xf32>, vector<36x384xf32>, vector<8x384xf32> -> vector<8x384xf32>
    %c0_16 = arith.constant 0 : index
    %c0_17 = arith.constant 0 : index
    %23 = vector.load %arg3[%c0_16, %c0_17] : memref<8x1xf32, #tpu.memory_space<vmem>>, vector<8x1xf32>
    %24 = vector.broadcast %23 : vector<8x1xf32> to vector<8x384xf32>
    %25 = arith.addf %22, %24 : vector<8x384xf32>
    %cst_18 = arith.constant 0.000000e+00 : f32
    %26 = vector.broadcast %cst_18 : f32 to vector<8x384xf32>
    %27 = arith.maximumf %25, %26 : vector<8x384xf32>
    %c0_19 = arith.constant 0 : index
    %c0_20 = arith.constant 0 : index
    %28 = vector.load %arg6[%c0_19, %c0_20] : memref<1x384xf32, #tpu.memory_space<vmem>>, vector<1x384xf32>
    %29 = vector.broadcast %28 : vector<1x384xf32> to vector<8x384xf32>
    %30 = arith.mulf %27, %29 : vector<8x384xf32>
    %c0_21 = arith.constant 0 : index
    %c0_22 = arith.constant 0 : index
    %31 = vector.load %arg9[%c0_21, %c0_22] : memref<8x512xf32, #tpu.memory_space<vmem>>, vector<8x384xf32>
    tpu.vector_store %arg9[%c0_21, %c0_22], %30 {strides = array<i32>} : memref<8x512xf32, #tpu.memory_space<vmem>>, vector<8x384xf32>,
    %cst_23 = arith.constant 0.000000e+00 : f32
    %32 = vector.broadcast %cst_23 : f32 to vector<8x128xf32>
    %c0_24 = arith.constant 0 : index
    %c384 = arith.constant 384 : index
    %33 = vector.load %arg9[%c0_24, %c384] : memref<8x512xf32, #tpu.memory_space<vmem>>, vector<8x128xf32>
    tpu.vector_store %arg9[%c0_24, %c384], %32 {strides = array<i32>} : memref<8x512xf32, #tpu.memory_space<vmem>>, vector<8x128xf32>,
    %c0_25 = arith.constant 0 : index
    %c0_26 = arith.constant 0 : index
    %34 = vector.load %arg9[%c0_25, %c0_26] : memref<8x512xf32, #tpu.memory_space<vmem>>, vector<8x384xf32>
    %c0_27 = arith.constant 0 : index
    %c0_28 = arith.constant 0 : index
    %35 = vector.load %arg10[%c0_27, %c0_28] : memref<32x384xf32, #tpu.memory_space<vmem>>, vector<8x384xf32>
    tpu.vector_store %arg10[%c0_27, %c0_28], %34 {strides = array<i32>} : memref<32x384xf32, #tpu.memory_space<vmem>>, vector<8x384xf32>,
    %c0_29 = arith.constant 0 : index
    %c1 = arith.constant 1 : index
    %36 = vector.load %arg9[%c0_29, %c1] : memref<8x512xf32, #tpu.memory_space<vmem>>, vector<8x384xf32>
    %c8_30 = arith.constant 8 : index
    %c0_31 = arith.constant 0 : index
    %37 = vector.load %arg10[%c8_30, %c0_31] : memref<32x384xf32, #tpu.memory_space<vmem>>, vector<8x384xf32>
    tpu.vector_store %arg10[%c8_30, %c0_31], %36 {strides = array<i32>} : memref<32x384xf32, #tpu.memory_space<vmem>>, vector<8x384xf32>,
    %c0_32 = arith.constant 0 : index
    %c18 = arith.constant 18 : index
    %38 = vector.load %arg9[%c0_32, %c18] : memref<8x512xf32, #tpu.memory_space<vmem>>, vector<8x384xf32>
    %c16_33 = arith.constant 16 : index
    %c0_34 = arith.constant 0 : index
    %39 = vector.load %arg10[%c16_33, %c0_34] : memref<32x384xf32, #tpu.memory_space<vmem>>, vector<8x384xf32>
    tpu.vector_store %arg10[%c16_33, %c0_34], %38 {strides = array<i32>} : memref<32x384xf32, #tpu.memory_space<vmem>>, vector<8x384xf32>,
    %c0_35 = arith.constant 0 : index
    %c19 = arith.constant 19 : index
    %40 = vector.load %arg9[%c0_35, %c19] : memref<8x512xf32, #tpu.memory_space<vmem>>, vector<8x384xf32>
    %c24_36 = arith.constant 24 : index
    %c0_37 = arith.constant 0 : index
    %41 = vector.load %arg10[%c24_36, %c0_37] : memref<32x384xf32, #tpu.memory_space<vmem>>, vector<8x384xf32>
    tpu.vector_store %arg10[%c24_36, %c0_37], %40 {strides = array<i32>} : memref<32x384xf32, #tpu.memory_space<vmem>>, vector<8x384xf32>,
    %c0_38 = arith.constant 0 : index
    %c0_39 = arith.constant 0 : index
    %42 = vector.load %arg4[%c0_38, %c0_39] : memref<16x32xf32, #tpu.memory_space<vmem>>, vector<16x32xf32>
    %c0_40 = arith.constant 0 : index
    %c0_41 = arith.constant 0 : index
    %43 = vector.load %arg10[%c0_40, %c0_41] : memref<32x384xf32, #tpu.memory_space<vmem>>, vector<32x384xf32>
    %cst_42 = arith.constant dense<0.000000e+00> : vector<16x384xf32>
    %44 = tpu.matmul %42, %43, %cst_42 {dimension_numbers = #tpu.dot_dimension_numbers<[1], [0], [0], [1], [0, 0, 1, 1], [], []>} : vector<16x32xf32>, vector<32x384xf32>, vector<16x384xf32> -> vector<16x384xf32>
    %c0_43 = arith.constant 0 : index
    %c0_44 = arith.constant 0 : index
    %45 = vector.load %arg5[%c0_43, %c0_44] : memref<16x1xf32, #tpu.memory_space<vmem>>, vector<16x1xf32>
    %46 = vector.broadcast %45 : vector<16x1xf32> to vector<16x384xf32>
    %47 = arith.addf %44, %46 : vector<16x384xf32>
    %cst_45 = arith.constant 0.000000e+00 : f32
    %48 = vector.broadcast %cst_45 : f32 to vector<16x384xf32>
    %49 = arith.maximumf %47, %48 : vector<16x384xf32>
    %c0_46 = arith.constant 0 : index
    %c0_47 = arith.constant 0 : index
    %c0_48 = arith.constant 0 : index
    %50 = vector.load %arg7[%c0_46, %c0_47, %c0_48] : memref<1x16x384xf32, #tpu.memory_space<vmem>>, vector<1x16x384xf32>
    %51 = vector.shape_cast %50 : vector<1x16x384xf32> to vector<16x384xf32>
    %52 = vector.shape_cast %49 : vector<16x384xf32> to vector<1x16x384xf32>
    tpu.vector_store %arg7[%c0_46, %c0_47, %c0_48], %52 {strides = array<i32>} : memref<1x16x384xf32, #tpu.memory_space<vmem>>, vector<1x16x384xf32>,
    return
  }
  func.func @transform_0(%arg0: i32) -> (i32, i32, i32) {
    %c0_i32 = arith.constant 0 : i32
    %c0_i32_0 = arith.constant 0 : i32
    %c0_i32_1 = arith.constant 0 : i32
    return %arg0, %c0_i32, %c0_i32_0 : i32, i32, i32
  }
  func.func @transform_1(%arg0: i32) -> (i32, i32) {
    %c0_i32 = arith.constant 0 : i32
    %c0_i32_0 = arith.constant 0 : i32
    %c0_i32_1 = arith.constant 0 : i32
    return %c0_i32, %c0_i32_0 : i32, i32
  }
  func.func @transform_2(%arg0: i32) -> (i32, i32) {
    %c0_i32 = arith.constant 0 : i32
    %c0_i32_0 = arith.constant 0 : i32
    %c0_i32_1 = arith.constant 0 : i32
    return %c0_i32, %c0_i32_0 : i32, i32
  }
  func.func @transform_3(%arg0: i32) -> (i32, i32) {
    %c0_i32 = arith.constant 0 : i32
    %c0_i32_0 = arith.constant 0 : i32
    %c0_i32_1 = arith.constant 0 : i32
    return %c0_i32, %c0_i32_0 : i32, i32
  }
  func.func @transform_4(%arg0: i32) -> (i32, i32) {
    %c0_i32 = arith.constant 0 : i32
    %c0_i32_0 = arith.constant 0 : i32
    %c0_i32_1 = arith.constant 0 : i32
    return %c0_i32, %c0_i32_0 : i32, i32
  }
  func.func @transform_5(%arg0: i32) -> (i32, i32) {
    %c0_i32 = arith.constant 0 : i32
    %c0_i32_0 = arith.constant 0 : i32
    %c0_i32_1 = arith.constant 0 : i32
    return %c0_i32, %c0_i32_0 : i32, i32
  }
  func.func @transform_6(%arg0: i32) -> (i32, i32, i32) {
    %c0_i32 = arith.constant 0 : i32
    %c0_i32_0 = arith.constant 0 : i32
    %c0_i32_1 = arith.constant 0 : i32
    return %arg0, %c0_i32, %c0_i32_0 : i32, i32, i32
  }
}

</mosaic_0001>

<llo_original>
// kernel: tpu_custom_call.1
$region0: #{tpu_custom_call.1}
  #allocation0 [shape = 'u32[]', space=smem, size = 0x4, offset = 0x4, fixed_abs, tag = 'smem constant byte address 0x4 - core index']
  #allocation1 [shape = 'u32[144,128]{1,0:T(1,128)}', space=vmem, size = 0x12000, scoped, tag = 'internal scratch']
  #allocation2 [shape = 'f32[36,384]{1,0:T(8,128)}', space=vmem, size = 0xf000, scoped, tag = 'scratch operand']
  #allocation3 [shape = 'f32[8,512]{1,0:T(8,128)}', space=vmem, size = 0x4000, scoped, tag = 'scratch operand']
  #allocation4 [shape = 'f32[32,384]{1,0:T(8,128)}', space=vmem, size = 0xc000, scoped, tag = 'scratch operand']
  %s0 = inlined_call_operand.hbm [shape: f32[2,4,512], index: 0, kind: input, shape index: {}]
  %s1 = inlined_call_operand.vmem [shape: f32[8,36], index: 1, kind: input, shape index: {}]
  %s2 = inlined_call_operand.vmem [shape: f32[8,1], index: 2, kind: input, shape index: {}]
  %s3 = inlined_call_operand.vmem [shape: f32[16,32], index: 3, kind: input, shape index: {}]
  %s4 = inlined_call_operand.vmem [shape: f32[16,1], index: 4, kind: input, shape index: {}]
  %s5 = inlined_call_operand.vmem [shape: f32[1,384], index: 5, kind: input, shape index: {}]
  %s6 = inlined_call_operand.hbm [shape: f32[2,16,384], index: 6, kind: output, shape index: {}]
  %s7 = sld [smem:[#allocation0]]
  $region61: #{tpu_custom_call.1} parent=0
    _
  %s9 = ssub.s32 1, %s7
  %s10 = scalar_select 0, %s9, %s7
  $region1: #{tpu_custom_call.1} parent=0
    #allocation5 [shape = 'u8[16384]{0}', space=vmem, size = 0x4000, scoped, tag = 'input window, operand 0']
    #allocation6 [shape = 's32[2]{0}', space=sflag, size = 0x8, scoped, tag = 'scoped memory for tpu_custom_call.1']
    #allocation7 [shape = 's32[2]{0}', space=sflag, size = 0x8, scoped, tag = 'scoped memory for tpu_custom_call.1']
    #allocation8 [shape = 'u8[49152]{0}', space=vmem, size = 0xc000, scoped, tag = 'output window, operand 0']
    %11 = vsyncpa [#allocation6], 0
    %s12 = scalar_lea.sflag [#allocation6], 1
    %13 = vsyncpa %s12, 0
    %14 = vsyncpa [#allocation7], 0
    %s15 = scalar_lea.sflag [#allocation7], 1
    %16 = vsyncpa %s15, 0
    loop: start=0, step=1, limit=4
    $region2: #{tpu_custom_call.1} parent=1 // loop_pre_header
      _
    $region3: #{tpu_custom_call.1} parent=1 // loop_header
      %s18 = sphi 0, %s22
      %p19 = scmp.ge.s32.totalorder %s18, 4
      %s28 = sphi 0, %s30
      %s31 = sphi 0, %s28
      %s32 = sphi 0, %s31
      %s48 = sphi 0, %s32
      %s52 = sphi 0, %s52
      %s54 = sphi 0, %s52
      %s55 = sphi 0, %s54
      %s69 = sphi 0, %s55
      %s73 = sphi 0, %s73
      %s75 = sphi 0, %s73
      %s76 = sphi 0, %s75
      %s90 = sphi 0, %s76
      %s94 = sphi 0, %s94
      %s96 = sphi 0, %s94
      %s97 = sphi 0, %s96
      %s111 = sphi 0, %s97
      %s115 = sphi 0, %s115
      %s117 = sphi 0, %s115
      %s118 = sphi 0, %s117
      %s132 = sphi 0, %s118
      %s136 = sphi 0, %s136
      %s138 = sphi 0, %s136
      %s139 = sphi 0, %s138
      %s153 = sphi 0, %s139
      %s159 = sphi 0, %s161
      %s162 = sphi 0, %s159
      %s163 = sphi 0, %s162
      %s179 = sphi 0, %s163
    $region4: #{tpu_custom_call.1} parent=1 // loop_header_branch
      %21 = sbr.rel (%p19) target = $region8
    $region5: #{tpu_custom_call.1} parent=1 // loop_body
      %s23 = ssub.s32 %s18, 1
      %s24 = ssub.s32 %s18, 2
      %s25 = sadd.s32 %s18, 1
      %s26 = ssub.s32 %s18, %s25
      %p27 = scmp.eq.s32.totalorder %s26, 0
      %s29 = sadd.s32 %s28, 1
      %s30 = scalar_select %p27, %s28, %s29
      %p33 = pneg %p27
      %p34 = scmp.eq.s32.totalorder %s18, 1
      %p35 = por %p33, %p34
      %p36 = scmp.ne.s32.totalorder %s28, %s31
      %p37 = scmp.eq.s32.totalorder %s18, 0
      %p38 = por %p36, %p37
      %p39 = scmp.ne.s32.totalorder %s28, %s31
      %p40 = scmp.eq.s32.totalorder %s23, 1
      %p41 = por %p39, %p40
      %p42 = scmp.ne.s32.totalorder %s31, %s32
      %p43 = scmp.eq.s32.totalorder %s23, 0
      %p44 = por %p42, %p43
      %p45 = scmp.ne.s32.totalorder %s31, %s32
      %p46 = scmp.eq.s32.totalorder %s24, 1
      %p47 = por %p45, %p46
      %p49 = scmp.ne.s32.totalorder %s32, %s48
      %p50 = scmp.eq.s32.totalorder %s24, 0
      %p51 = por %p49, %p50
      %s53 = sadd.s32 %s52, 1
      %p56 = scmp.eq.s32.totalorder %s18, 1
      %p57 = scmp.ne.s32.totalorder %s52, %s54
      %p58 = scmp.eq.s32.totalorder %s18, 0
      %p59 = por %p57, %p58
      %p60 = scmp.ne.s32.totalorder %s52, %s54
      %p61 = scmp.eq.s32.totalorder %s23, 1
      %p62 = por %p60, %p61
      %p63 = scmp.ne.s32.totalorder %s54, %s55
      %p64 = scmp.eq.s32.totalorder %s23, 0
      %p65 = por %p63, %p64
      %p66 = scmp.ne.s32.totalorder %s54, %s55
      %p67 = scmp.eq.s32.totalorder %s24, 1
      %p68 = por %p66, %p67
      %p70 = scmp.ne.s32.totalorder %s55, %s69
      %p71 = scmp.eq.s32.totalorder %s24, 0
      %p72 = por %p70, %p71
      %s74 = sadd.s32 %s73, 1
      %p77 = scmp.eq.s32.totalorder %s18, 1
      %p78 = scmp.ne.s32.totalorder %s73, %s75
      %p79 = scmp.eq.s32.totalorder %s18, 0
      %p80 = por %p78, %p79
      %p81 = scmp.ne.s32.totalorder %s73, %s75
      %p82 = scmp.eq.s32.totalorder %s23, 1
      %p83 = por %p81, %p82
      %p84 = scmp.ne.s32.totalorder %s75, %s76
      %p85 = scmp.eq.s32.totalorder %s23, 0
      %p86 = por %p84, %p85
      %p87 = scmp.ne.s32.totalorder %s75, %s76
      %p88 = scmp.eq.s32.totalorder %s24, 1
      %p89 = por %p87, %p88
      %p91 = scmp.ne.s32.totalorder %s76, %s90
      %p92 = scmp.eq.s32.totalorder %s24, 0
      %p93 = por %p91, %p92
      %s95 = sadd.s32 %s94, 1
      %p98 = scmp.eq.s32.totalorder %s18, 1
      %p99 = scmp.ne.s32.totalorder %s94, %s96
      %p100 = scmp.eq.s32.totalorder %s18, 0
      %p101 = por %p99, %p100
      %p102 = scmp.ne.s32.totalorder %s94, %s96
      %p103 = scmp.eq.s32.totalorder %s23, 1
      %p104 = por %p102, %p103
      %p105 = scmp.ne.s32.totalorder %s96, %s97
      %p106 = scmp.eq.s32.totalorder %s23, 0
      %p107 = por %p105, %p106
      %p108 = scmp.ne.s32.totalorder %s96, %s97
      %p109 = scmp.eq.s32.totalorder %s24, 1
      %p110 = por %p108, %p109
      %p112 = scmp.ne.s32.totalorder %s97, %s111
      %p113 = scmp.eq.s32.totalorder %s24, 0
      %p114 = por %p112, %p113
      %s116 = sadd.s32 %s115, 1
      %p119 = scmp.eq.s32.totalorder %s18, 1
      %p120 = scmp.ne.s32.totalorder %s115, %s117
      %p121 = scmp.eq.s32.totalorder %s18, 0
      %p122 = por %p120, %p121
      %p123 = scmp.ne.s32.totalorder %s115, %s117
      %p124 = scmp.eq.s32.totalorder %s23, 1
      %p125 = por %p123, %p124
      %p126 = scmp.ne.s32.totalorder %s117, %s118
      %p127 = scmp.eq.s32.totalorder %s23, 0
      %p128 = por %p126, %p127
      %p129 = scmp.ne.s32.totalorder %s117, %s118
      %p130 = scmp.eq.s32.totalorder %s24, 1
      %p131 = por %p129, %p130
      %p133 = scmp.ne.s32.totalorder %s118, %s132
      %p134 = scmp.eq.s32.totalorder %s24, 0
      %p135 = por %p133, %p134
      %s137 = sadd.s32 %s136, 1
      %p140 = scmp.eq.s32.totalorder %s18, 1
      %p141 = scmp.ne.s32.totalorder %s136, %s138
      %p142 = scmp.eq.s32.totalorder %s18, 0
      %p143 = por %p141, %p142
      %p144 = scmp.ne.s32.totalorder %s136, %s138
      %p145 = scmp.eq.s32.totalorder %s23, 1
      %p146 = por %p144, %p145
      %p147 = scmp.ne.s32.totalorder %s138, %s139
      %p148 = scmp.eq.s32.totalorder %s23, 0
      %p149 = por %p147, %p148
      %p150 = scmp.ne.s32.totalorder %s138, %s139
      %p151 = scmp.eq.s32.totalorder %s24, 1
      %p152 = por %p150, %p151
      %p154 = scmp.ne.s32.totalorder %s139, %s153
      %p155 = scmp.eq.s32.totalorder %s24, 0
      %p156 = por %p154, %p155
      %s157 = ssub.s32 %s18, %s25
      %p158 = scmp.eq.s32.totalorder %s157, 0
      %s160 = sadd.s32 %s159, 1
      %s161 = scalar_select %p158, %s159, %s160
      %p164 = pneg %p158
      %p165 = scmp.eq.s32.totalorder %s18, 1
      %p166 = por %p164, %p165
      %p167 = scmp.ne.s32.totalorder %s159, %s162
      %p168 = scmp.eq.s32.totalorder %s18, 0
      %p169 = por %p167, %p168
      %p170 = scmp.ne.s32.totalorder %s159, %s162
      %p171 = scmp.eq.s32.totalorder %s23, 1
      %p172 = por %p170, %p171
      %p173 = scmp.ne.s32.totalorder %s162, %s163
      %p174 = scmp.eq.s32.totalorder %s23, 0
      %p175 = por %p173, %p174
      %p176 = scmp.ne.s32.totalorder %s162, %s163
      %p177 = scmp.eq.s32.totalorder %s24, 1
      %p178 = por %p176, %p177
      %p180 = scmp.ne.s32.totalorder %s163, %s179
      %p181 = scmp.eq.s32.totalorder %s24, 0
      %p182 = por %p180, %p181
      %p183 = scmp.le.s32.totalorder 1, %s18
      %p184 = scmp.lt.s32.totalorder %s18, 3
      %p185 = pnand %p183, %p184
      %p186 = pneg %p185
      // Predicated region
      $region9: #{tpu_custom_call.1} parent=5 // pred_check
        _
      $region10: #{tpu_custom_call.1} parent=5 // pred_check_branch
        %188 = sbr.rel (%p185) target = $region12
      $region11: #{tpu_custom_call.1} parent=5 // pred_region
        %s189 = ssub.s32 %s18, 1
        // Predicated region
        $region13: #{tpu_custom_call.1} parent=11 // pred_check
          %p190 = pneg %p65
        $region14: #{tpu_custom_call.1} parent=11 // pred_check_branch
          %192 = sbr.rel (%p190) target = $region16
        $region15: #{tpu_custom_call.1} parent=11 // pred_region
          _
        $region16: #{tpu_custom_call.1} parent=11 // pred_fallthru
          _
        // Predicated region
        $region17: #{tpu_custom_call.1} parent=11 // pred_check
          %p193 = pneg %p86
        $region18: #{tpu_custom_call.1} parent=11 // pred_check_branch
          %195 = sbr.rel (%p193) target = $region20
        $region19: #{tpu_custom_call.1} parent=11 // pred_region
          _
        $region20: #{tpu_custom_call.1} parent=11 // pred_fallthru
          _
        // Predicated region
        $region21: #{tpu_custom_call.1} parent=11 // pred_check
          %p196 = pneg %p107
        $region22: #{tpu_custom_call.1} parent=11 // pred_check_branch
          %198 = sbr.rel (%p196) target = $region24
        $region23: #{tpu_custom_call.1} parent=11 // pred_region
          _
        $region24: #{tpu_custom_call.1} parent=11 // pred_fallthru
          _
        // Predicated region
        $region25: #{tpu_custom_call.1} parent=11 // pred_check
          %p199 = pneg %p128
        $region26: #{tpu_custom_call.1} parent=11 // pred_check_branch
          %201 = sbr.rel (%p199) target = $region28
        $region27: #{tpu_custom_call.1} parent=11 // pred_region
          _
        $region28: #{tpu_custom_call.1} parent=11 // pred_fallthru
          _
        // Predicated region
        $region29: #{tpu_custom_call.1} parent=11 // pred_check
          %p202 = pneg %p149
        $region30: #{tpu_custom_call.1} parent=11 // pred_check_branch
          %204 = sbr.rel (%p202) target = $region32
        $region31: #{tpu_custom_call.1} parent=11 // pred_region
          _
        $region32: #{tpu_custom_call.1} parent=11 // pred_fallthru
          _
      $region12: #{tpu_custom_call.1} parent=5 // pred_fallthru
        _
      %p205 = scmp.lt.s32.totalorder %s18, 2
      // Predicated region
      $region33: #{tpu_custom_call.1} parent=5 // pred_check
        %p206 = pneg %p205
      $region34: #{tpu_custom_call.1} parent=5 // pred_check_branch
        %208 = sbr.rel (%p206) target = $region36
      $region35: #{tpu_custom_call.1} parent=5 // pred_region
        // Predicated region
        $region37: #{tpu_custom_call.1} parent=35 // pred_check
          %p209 = pneg %p38
        $region38: #{tpu_custom_call.1} parent=35 // pred_check_branch
          %211 = sbr.rel (%p209) target = $region40
        $region39: #{tpu_custom_call.1} parent=35 // pred_region
          %s212 = sand.u32 %s28, 1
          %s213 = scalar_lea.sflag [#allocation6], %s212
          %s214 = sand.u32 %s28, 1
          %s215 = smul.addr %s214, 16
          %s216 = scalar_lea.vmem [#allocation5], %s215
          %s218 = ssub.s32 256, 256
          %219 = vsyncadd %s213, %s218
          %s220 = smul.addr %s18, 4
          %s221 = smul.addr %s220, 64
          %s222 = scalar_lea.hbm %s0, %s221
          %s224 = sshll.u32 %s216, 4
          %s225 = int_to_ptr.vmem [resolvable:$true] %s224
          %227 = dma.hbm_to_vmem [thread:$0]  %s222, 256, %s225, %s213
        $region40: #{tpu_custom_call.1} parent=35 // pred_fallthru
          _
      $region36: #{tpu_custom_call.1} parent=5 // pred_fallthru
        _
      %p228 = scmp.le.s32.totalorder 1, %s18
      %p229 = scmp.lt.s32.totalorder %s18, 3
      %p230 = pnand %p228, %p229
      %p231 = pneg %p230
      // Predicated region
      $region41: #{tpu_custom_call.1} parent=5 // pred_check
        _
      $region42: #{tpu_custom_call.1} parent=5 // pred_check_branch
        %233 = sbr.rel (%p230) target = $region44
      $region43: #{tpu_custom_call.1} parent=5 // pred_region
        %s234 = ssub.s32 %s18, 1
        %s235 = sand.u32 %s31, 1
        %s236 = scalar_lea.sflag [#allocation6], %s235
        %s237 = sand.u32 %s31, 1
        %s238 = smul.addr %s237, 16
        %s239 = scalar_lea.vmem [#allocation5], %s238
        // Predicated region
        $region45: #{tpu_custom_call.1} parent=43 // pred_check
          %p240 = pneg %p44
        $region46: #{tpu_custom_call.1} parent=43 // pred_check_branch
          %242 = sbr.rel (%p240) target = $region48
        $region47: #{tpu_custom_call.1} parent=43 // pred_region
          %243 = dma.done %s236, 256
        $region48: #{tpu_custom_call.1} parent=43 // pred_fallthru
          _
        %s244 = sand.u32 %s31, 1
        %s245 = scalar_lea.sflag [#allocation6], %s244
        %s246 = sand.u32 %s31, 1
        %s247 = smul.addr %s246, 16
        %s248 = scalar_lea.vmem [#allocation5], %s247
        %p249 = pneg %p44
        %p250 = pneg %p41
        %p251 = pneg %p65
        %p252 = pneg %p62
        %p253 = pneg %p86
        %p254 = pneg %p83
        %p255 = pneg %p107
        %p256 = pneg %p104
        %p257 = pneg %p128
        %p258 = pneg %p125
        %p259 = pneg %p149
        %p260 = pneg %p146
        %p261 = pneg %p175
        %p262 = pneg %p172
        %s263 = sand.u32 %s162, 1
        %s264 = scalar_lea.sflag [#allocation7], %s263
        %s265 = sand.u32 %s162, 1
        %s266 = smul.addr %s265, 48
        %s267 = scalar_lea.vmem [#allocation8], %s266
        %v268 = vld [vmem:[%s239] sm:$0xff]
        %v269 = vld [vmem:[%s239 + $0x8] sm:$0xff]
        %v272 = vcombine.high %v268, %v268
        %274 = vst [vmem:[#allocation2] sm:$0xf] %v268
        %275 = vst [vmem:[#allocation2 + $0x8] sm:$0xf] %v272
        %276 = vst [vmem:[#allocation2 + $0x10] sm:$0xf] %v269
        %v277 = vcombine.low %v268, %v268
        %v278 = vcombine.low %v269, %v269
        %279 = vrot.lane.b32.xlu0 %v277, 127
        %v280 = vpop.permute.xlu0 %279
        %281 = vrot.lane.b32.xlu0 %v268, 127
        %v282 = vpop.permute.xlu0 %281
        %283 = vrot.lane.b32.xlu0 %v278, 127
        %v284 = vpop.permute.xlu0 %283
        %285 = vrot.lane.b32.xlu0 %v269, 127
        %v286 = vpop.permute.xlu0 %285
        %vm287 = vcmask 1039360
        %v288 = vsel %vm287, %v280, %v282
        %v289 = vsel %vm287, %v282, %v284
        %v290 = vsel %vm287, %v284, %v286
        %294 = vst [vmem:[#allocation2] sm:$0xf0] %v288
        %295 = vst [vmem:[#allocation2 + $0x8] sm:$0xf0] %v289
        %296 = vst [vmem:[#allocation2 + $0x10] sm:$0xf0] %v290
        %v297 = vcombine.high %v269, %v269
        %298 = vrot.lane.b32.xlu0 %v268, 126
        %v299 = vpop.permute.xlu0 %298
        %300 = vrot.lane.b32.xlu0 %v272, 126
        %v301 = vpop.permute.xlu0 %300
        %302 = vrot.lane.b32.xlu0 %v269, 126
        %v303 = vpop.permute.xlu0 %302
        %304 = vrot.lane.b32.xlu0 %v297, 126
        %v305 = vpop.permute.xlu0 %304
        %vm306 = vcmask 1031168
        %v307 = vsel %vm306, %v299, %v301
        %v308 = vsel %vm306, %v301, %v303
        %v309 = vsel %vm306, %v303, %v305
        %313 = vst [vmem:[#allocation2 + $0x18] sm:$0xf] %v307
        %314 = vst [vmem:[#allocation2 + $0x20] sm:$0xf] %v308
        %315 = vst [vmem:[#allocation2 + $0x28] sm:$0xf] %v309
        %316 = vrot.lane.b32.xlu0 %v277, 110
        %v317 = vpop.permute.xlu0 %316
        %318 = vrot.lane.b32.xlu0 %v268, 110
        %v319 = vpop.permute.xlu0 %318
        %320 = vrot.lane.b32.xlu0 %v278, 110
        %v321 = vpop.permute.xlu0 %320
        %322 = vrot.lane.b32.xlu0 %v269, 110
        %v323 = vpop.permute.xlu0 %322
        %vm324 = vcmask 900096
        %v325 = vsel %vm324, %v317, %v319
        %v326 = vsel %vm324, %v319, %v321
        %v327 = vsel %vm324, %v321, %v323
        %331 = vst [vmem:[#allocation2 + $0x18] sm:$0xf0] %v325
        %332 = vst [vmem:[#allocation2 + $0x20] sm:$0xf0] %v326
        %333 = vst [vmem:[#allocation2 + $0x28] sm:$0xf0] %v327
        %334 = vrot.lane.b32.xlu0 %v268, 109
        %v335 = vpop.permute.xlu0 %334
        %336 = vrot.lane.b32.xlu0 %v272, 109
        %v337 = vpop.permute.xlu0 %336
        %338 = vrot.lane.b32.xlu0 %v269, 109
        %v339 = vpop.permute.xlu0 %338
        %340 = vrot.lane.b32.xlu0 %v297, 109
        %v341 = vpop.permute.xlu0 %340
        %vm342 = vcmask 891904
        %v343 = vsel %vm342, %v335, %v337
        %v344 = vsel %vm342, %v337, %v339
        %v345 = vsel %vm342, %v339, %v341
        %349 = vst [vmem:[#allocation2 + $0x30] sm:$0xf] %v343
        %350 = vst [vmem:[#allocation2 + $0x38] sm:$0xf] %v344
        %351 = vst [vmem:[#allocation2 + $0x40] sm:$0xf] %v345
        %352 = vrot.lane.b32.xlu0 %v277, 108
        %v353 = vpop.permute.xlu0 %352
        %354 = vrot.lane.b32.xlu0 %v268, 108
        %v355 = vpop.permute.xlu0 %354
        %356 = vrot.lane.b32.xlu0 %v278, 108
        %v357 = vpop.permute.xlu0 %356
        %358 = vrot.lane.b32.xlu0 %v269, 108
        %v359 = vpop.permute.xlu0 %358
        %vm360 = vcmask 883712
        %v361 = vsel %vm360, %v353, %v355
        %v362 = vsel %vm360, %v355, %v357
        %v363 = vsel %vm360, %v357, %v359
        %367 = vst [vmem:[#allocation2 + $0x30] sm:$0xf0] %v361
        %368 = vst [vmem:[#allocation2 + $0x38] sm:$0xf0] %v362
        %369 = vst [vmem:[#allocation2 + $0x40] sm:$0xf0] %v363
        %370 = vrot.lane.b32.xlu0 %v268, 92
        %v371 = vpop.permute.xlu0 %370
        %372 = vrot.lane.b32.xlu0 %v272, 92
        %v373 = vpop.permute.xlu0 %372
        %374 = vrot.lane.b32.xlu0 %v269, 92
        %v375 = vpop.permute.xlu0 %374
        %376 = vrot.lane.b32.xlu0 %v297, 92
        %v377 = vpop.permute.xlu0 %376
        %vm378 = vcmask 752640
        %v379 = vsel %vm378, %v371, %v373
        %v380 = vsel %vm378, %v373, %v375
        %v381 = vsel %vm378, %v375, %v377
        %385 = vst [vmem:[#allocation2 + $0x48] sm:$0xf] %v379
        %386 = vst [vmem:[#allocation2 + $0x50] sm:$0xf] %v380
        %387 = vst [vmem:[#allocation2 + $0x58] sm:$0xf] %v381
        %388 = vrot.lane.b32.xlu0 %v277, 91
        %v389 = vpop.permute.xlu0 %388
        %390 = vrot.lane.b32.xlu0 %v268, 91
        %v391 = vpop.permute.xlu0 %390
        %392 = vrot.lane.b32.xlu0 %v278, 91
        %v393 = vpop.permute.xlu0 %392
        %394 = vrot.lane.b32.xlu0 %v269, 91
        %v395 = vpop.permute.xlu0 %394
        %vm396 = vcmask 744448
        %v397 = vsel %vm396, %v389, %v391
        %v398 = vsel %vm396, %v391, %v393
        %v399 = vsel %vm396, %v393, %v395
        %403 = vst [vmem:[#allocation2 + $0x48] sm:$0xf0] %v397
        %404 = vst [vmem:[#allocation2 + $0x50] sm:$0xf0] %v398
        %405 = vst [vmem:[#allocation2 + $0x58] sm:$0xf0] %v399
        %406 = vrot.lane.b32.xlu0 %v268, 90
        %v407 = vpop.permute.xlu0 %406
        %408 = vrot.lane.b32.xlu0 %v272, 90
        %v409 = vpop.permute.xlu0 %408
        %410 = vrot.lane.b32.xlu0 %v269, 90
        %v411 = vpop.permute.xlu0 %410
        %412 = vrot.lane.b32.xlu0 %v297, 90
        %v413 = vpop.permute.xlu0 %412
        %vm414 = vcmask 736256
        %v415 = vsel %vm414, %v407, %v409
        %v416 = vsel %vm414, %v409, %v411
        %v417 = vsel %vm414, %v411, %v413
        %421 = vst [vmem:[#allocation2 + $0x60] sm:$0xf] %v415
        %422 = vst [vmem:[#allocation2 + $0x68] sm:$0xf] %v416
        %423 = vst [vmem:[#allocation2 + $0x70] sm:$0xf] %v417
        %v424 = vld [vmem:[%s1] sm:$0xff]
        %v425 = vld [vmem:[#allocation2] sm:$0xff]
        %v426 = vld [vmem:[#allocation2 + $0x8] sm:$0xff]
        %v427 = vld [vmem:[#allocation2 + $0x10] sm:$0xff]
        %v428 = vld [vmem:[#allocation2 + $0x18] sm:$0xff]
        %v429 = vld [vmem:[#allocation2 + $0x20] sm:$0xff]
        %v430 = vld [vmem:[#allocation2 + $0x28] sm:$0xff]
        %v431 = vld [vmem:[#allocation2 + $0x30] sm:$0xff]
        %v432 = vld [vmem:[#allocation2 + $0x38] sm:$0xff]
        %v433 = vld [vmem:[#allocation2 + $0x40] sm:$0xff]
        %v434 = vld [vmem:[#allocation2 + $0x48] sm:$0xff]
        %v435 = vld [vmem:[#allocation2 + $0x50] sm:$0xff]
        %v436 = vld [vmem:[#allocation2 + $0x58] sm:$0xff]
        %v437 = vld [vmem:[#allocation2 + $0x60] sm:$0xf]
        %v438 = vld [vmem:[#allocation2 + $0x68] sm:$0xf]
        %v439 = vld [vmem:[#allocation2 + $0x70] sm:$0xf]
        %v440 = vld [vmem:[%s2] sm:$0xff]
        %442 = vset.pattern.permute.xlu0 0
        %443 = vperm.xlu0 %442, %v440
        %v444 = vpop.permute.xlu0 %443
        %vm446 = vcmask 293888
        %v448 = vsel %vm446, %v424, 0
        %vm450 = vcmask 1043456
        %v452 = vsel %vm450, %v437, 0
        %v455 = vsel %vm450, %v438, 0
        %v458 = vsel %vm450, %v439, 0
        %460 = vmatprep.subr.mxu0 %v426
        %461 = vmatpush1.msra.mxu0 %v425
        %462 = vmatprep.subr.mxu0 %v429
        %463 = vmatpush1.msra.mxu0 %v428
        %464 = vmatprep.subr.mxu0 %v432
        %465 = vmatpush1.msra.mxu0 %v431
        %466 = vmatprep.subr.mxu0 %v435
        %467 = vmatpush1.msra.mxu0 %v434
        %468 = vmatprep.subr.mxu0 %v455
        %469 = vmatpush1.msra.mxu0 %v452
        %470 = vmatprep.subr.mxu0 0.0
        %471 = vmatpush1.msra.mxu0 0.0
        %472 = vmatprep.subr.mxu0 0.0
        %473 = vmatpush1.msra.mxu0 0.0
        %474 = vmatprep.subr.mxu0 0.0
        %475 = vmatpush1.msra.mxu0 0.0
        %476 = vmatprep.subr.mxu0 0.0
        %477 = vmatpush1.msra.mxu0 0.0
        %478 = vmatprep.subr.mxu0 0.0
        %479 = vmatpush1.msra.mxu0 0.0
        %480 = vmatprep.subr.mxu0 0.0
        %481 = vmatpush1.msra.mxu0 0.0
        %482 = vmatprep.subr.mxu0 0.0
        %483 = vmatpush1.msra.mxu0 0.0
        %484 = vmatprep.subr.mxu0 0.0
        %485 = vmatpush1.msra.mxu0 0.0
        %486 = vmatprep.subr.mxu0 0.0
        %487 = vmatpush1.msra.mxu0 0.0
        %488 = vmatprep.subr.mxu0 0.0
        %489 = vmatpush1.msra.mxu0 0.0
        %490 = vmatprep.subr.mxu0 0.0
        %491 = vmatpush1.msra.mxu0 0.0
        %492 = vmatprep.subr.mxu0 0.0
        %493 = vmatpush1.msra.mxu0 0.0
        %494 = vmatprep.subr.mxu0 0.0
        %495 = vmatpush1.msra.mxu0 0.0
        %496 = vmatprep.subr.mxu0 0.0
        %497 = vmatpush1.msra.mxu0 0.0
        %498 = vmatprep.subr.mxu0 0.0
        %499 = vmatpush1.msra.mxu0 0.0
        %500 = vmatprep.subr.mxu0 0.0
        %501 = vmatpush1.msra.mxu0 0.0
        %502 = vmatprep.subr.mxu0 0.0
        %503 = vmatpush1.msra.mxu0 0.0
        %504 = vmatprep.subr.mxu0 0.0
        %505 = vmatpush1.msra.mxu0 0.0
        %506 = vmatprep.subr.mxu0 0.0
        %507 = vmatpush1.msra.mxu0 0.0
        %508 = vmatprep.subr.mxu0 0.0
        %509 = vmatpush1.msra.mxu0 0.0
        %510 = vmatprep.subr.mxu0 0.0
        %511 = vmatpush1.msra.mxu0 0.0
        %512 = vmatprep.subr.mxu0 0.0
        %513 = vmatpush1.msra.mxu0 0.0
        %514 = vmatprep.subr.mxu0 0.0
        %515 = vmatpush1.msra.mxu0 0.0
        %516 = vmatprep.subr.mxu0 0.0
        %517 = vmatpush1.msra.mxu0 0.0
        %518 = vmatprep.subr.mxu0 0.0
        %519 = vmatpush1.msra.mxu0 0.0
        %520 = vmatprep.subr.mxu0 0.0
        %521 = vmatpush1.msra.mxu0 0.0
        %522 = vmatprep.subr.mxu0 0.0
        %523 = vmatpush1.msra.mxu0 0.0
        %524 = vmatprep.mubr.f32.mxu0 0.0
        %525 = vmatmul.mubr.f32.gmra.mrb[0].mxu0 %v448
        %v526 = vpop.f32.mrb[0].mxu0
        %v527 = vadd.f32 %v444, %v526
        %v528 = vpop.f32.mrb[0].mxu0
        %v529 = vadd.f32 %v444, %v528
        %530 = vdwg.mxu0
        %531 = vmatprep.subr.mxu0 0.0
        %532 = vmatpush1.msra.mxu0 %v427
        %533 = vmatprep.subr.mxu0 0.0
        %534 = vmatpush1.msra.mxu0 %v430
        %535 = vmatprep.subr.mxu0 0.0
        %536 = vmatpush1.msra.mxu0 %v433
        %537 = vmatprep.subr.mxu0 0.0
        %538 = vmatpush1.msra.mxu0 %v436
        %539 = vmatprep.subr.mxu0 0.0
        %540 = vmatpush1.msra.mxu0 %v458
        %541 = vmatprep.subr.mxu0 0.0
        %542 = vmatpush1.msra.mxu0 0.0
        %543 = vmatprep.subr.mxu0 0.0
        %544 = vmatpush1.msra.mxu0 0.0
        %545 = vmatprep.subr.mxu0 0.0
        %546 = vmatpush1.msra.mxu0 0.0
        %547 = vmatprep.subr.mxu0 0.0
        %548 = vmatpush1.msra.mxu0 0.0
        %549 = vmatprep.subr.mxu0 0.0
        %550 = vmatpush1.msra.mxu0 0.0
        %551 = vmatprep.subr.mxu0 0.0
        %552 = vmatpush1.msra.mxu0 0.0
        %553 = vmatprep.subr.mxu0 0.0
        %554 = vmatpush1.msra.mxu0 0.0
        %555 = vmatprep.subr.mxu0 0.0
        %556 = vmatpush1.msra.mxu0 0.0
        %557 = vmatprep.subr.mxu0 0.0
        %558 = vmatpush1.msra.mxu0 0.0
        %559 = vmatprep.subr.mxu0 0.0
        %560 = vmatpush1.msra.mxu0 0.0
        %561 = vmatprep.subr.mxu0 0.0
        %562 = vmatpush1.msra.mxu0 0.0
        %563 = vmatprep.subr.mxu0 0.0
        %564 = vmatpush1.msra.mxu0 0.0
        %565 = vmatprep.subr.mxu0 0.0
        %566 = vmatpush1.msra.mxu0 0.0
        %567 = vmatprep.subr.mxu0 0.0
        %568 = vmatpush1.msra.mxu0 0.0
        %569 = vmatprep.subr.mxu0 0.0
        %570 = vmatpush1.msra.mxu0 0.0
        %571 = vmatprep.subr.mxu0 0.0
        %572 = vmatpush1.msra.mxu0 0.0
        %573 = vmatprep.subr.mxu0 0.0
        %574 = vmatpush1.msra.mxu0 0.0
        %575 = vmatprep.subr.mxu0 0.0
        %576 = vmatpush1.msra.mxu0 0.0
        %577 = vmatprep.subr.mxu0 0.0
        %578 = vmatpush1.msra.mxu0 0.0
        %579 = vmatprep.subr.mxu0 0.0
        %580 = vmatpush1.msra.mxu0 0.0
        %581 = vmatprep.subr.mxu0 0.0
        %582 = vmatpush1.msra.mxu0 0.0
        %583 = vmatprep.subr.mxu0 0.0
        %584 = vmatpush1.msra.mxu0 0.0
        %585 = vmatprep.subr.mxu0 0.0
        %586 = vmatpush1.msra.mxu0 0.0
        %587 = vmatprep.subr.mxu0 0.0
        %588 = vmatpush1.msra.mxu0 0.0
        %589 = vmatprep.subr.mxu0 0.0
        %590 = vmatpush1.msra.mxu0 0.0
        %591 = vmatprep.subr.mxu0 0.0
        %592 = vmatpush1.msra.mxu0 0.0
        %593 = vmatprep.subr.mxu0 0.0
        %594 = vmatpush1.msra.mxu0 0.0
        %595 = vmatprep.mubr.f32.mxu0 0.0
        %596 = vmatmul.mubr.f32.gmra.mrb[0].mxu0 %v448
        %v597 = vpop.f32.mrb[0].mxu0
        %v598 = vadd.f32 %v444, %v597
        %v599 = vpop.f32.mrb[0].mxu0
        %600 = vdwg.mxu0
        %v601 = vmax.f32 %v527, 0.0
        %v602 = vmax.f32 %v529, 0.0
        %v603 = vmax.f32 %v598, 0.0
        %v604 = vld [vmem:[%s5] sm:$0x7]
        %v606 = vlaneseq
        %v607 = vshrl.u32 %v606, 7
        %v608 = vsub.s32 0, %v607
        %v609 = vrot.slane %v604, %v608
        %v610 = vlaneseq
        %v611 = vshrl.u32 %v610, 7
        %v612 = vsub.s32 1, %v611
        %v613 = vrot.slane %v604, %v612
        %v614 = vlaneseq
        %v615 = vshrl.u32 %v614, 7
        %v616 = vsub.s32 2, %v615
        %v617 = vrot.slane %v604, %v616
        %v621 = vmul.f32 %v601, %v609
        %v622 = vmul.f32 %v602, %v613
        %v623 = vmul.f32 %v603, %v617
        %624 = vst [vmem:[#allocation3] sm:$0xff] %v621
        %625 = vst [vmem:[#allocation3 + $0x8] sm:$0xff] %v622
        %626 = vst [vmem:[#allocation3 + $0x10] sm:$0xff] %v623
        %627 = vst [vmem:[#allocation3 + $0x18] sm:$0xff] 0.0
        %v628 = vld [vmem:[#allocation3] sm:$0xff]
        %v629 = vld [vmem:[#allocation3 + $0x8] sm:$0xff]
        %v630 = vld [vmem:[#allocation3 + $0x10] sm:$0xff]
        %631 = vst [vmem:[#allocation4] sm:$0xff] %v628
        %632 = vst [vmem:[#allocation4 + $0x8] sm:$0xff] %v629
        %633 = vst [vmem:[#allocation4 + $0x10] sm:$0xff] %v630
        %v634 = vld [vmem:[#allocation3] sm:$0xff]
        %v635 = vld [vmem:[#allocation3 + $0x8] sm:$0xff]
        %v636 = vld [vmem:[#allocation3 + $0x10] sm:$0xff]
        %v637 = vld [vmem:[#allocation3 + $0x18] sm:$0xff]
        %642 = vrot.lane.b32.xlu0 %v634, 127
        %v643 = vpop.permute.xlu0 %642
        %644 = vrot.lane.b32.xlu0 %v635, 127
        %v645 = vpop.permute.xlu0 %644
        %646 = vrot.lane.b32.xlu0 %v636, 127
        %v647 = vpop.permute.xlu0 %646
        %648 = vrot.lane.b32.xlu0 %v637, 127
        %v649 = vpop.permute.xlu0 %648
        %v650 = vsel %vm287, %v643, %v645
        %v651 = vsel %vm287, %v645, %v647
        %v652 = vsel %vm287, %v647, %v649
        %656 = vst [vmem:[#allocation4 + $0x18] sm:$0xff] %v650
        %657 = vst [vmem:[#allocation4 + $0x20] sm:$0xff] %v651
        %658 = vst [vmem:[#allocation4 + $0x28] sm:$0xff] %v652
        %v659 = vld [vmem:[#allocation3] sm:$0xff]
        %v660 = vld [vmem:[#allocation3 + $0x8] sm:$0xff]
        %v661 = vld [vmem:[#allocation3 + $0x10] sm:$0xff]
        %v662 = vld [vmem:[#allocation3 + $0x18] sm:$0xff]
        %667 = vrot.lane.b32.xlu0 %v659, 110
        %v668 = vpop.permute.xlu0 %667
        %669 = vrot.lane.b32.xlu0 %v660, 110
        %v670 = vpop.permute.xlu0 %669
        %671 = vrot.lane.b32.xlu0 %v661, 110
        %v672 = vpop.permute.xlu0 %671
        %673 = vrot.lane.b32.xlu0 %v662, 110
        %v674 = vpop.permute.xlu0 %673
        %v675 = vsel %vm324, %v668, %v670
        %v676 = vsel %vm324, %v670, %v672
        %v677 = vsel %vm324, %v672, %v674
        %681 = vst [vmem:[#allocation4 + $0x30] sm:$0xff] %v675
        %682 = vst [vmem:[#allocation4 + $0x38] sm:$0xff] %v676
        %683 = vst [vmem:[#allocation4 + $0x40] sm:$0xff] %v677
        %v684 = vld [vmem:[#allocation3] sm:$0xff]
        %v685 = vld [vmem:[#allocation3 + $0x8] sm:$0xff]
        %v686 = vld [vmem:[#allocation3 + $0x10] sm:$0xff]
        %v687 = vld [vmem:[#allocation3 + $0x18] sm:$0xff]
        %692 = vrot.lane.b32.xlu0 %v684, 109
        %v693 = vpop.permute.xlu0 %692
        %694 = vrot.lane.b32.xlu0 %v685, 109
        %v695 = vpop.permute.xlu0 %694
        %696 = vrot.lane.b32.xlu0 %v686, 109
        %v697 = vpop.permute.xlu0 %696
        %698 = vrot.lane.b32.xlu0 %v687, 109
        %v699 = vpop.permute.xlu0 %698
        %v700 = vsel %vm342, %v693, %v695
        %v701 = vsel %vm342, %v695, %v697
        %v702 = vsel %vm342, %v697, %v699
        %706 = vst [vmem:[#allocation4 + $0x48] sm:$0xff] %v700
        %707 = vst [vmem:[#allocation4 + $0x50] sm:$0xff] %v701
        %708 = vst [vmem:[#allocation4 + $0x58] sm:$0xff] %v702
        %v709 = vld [vmem:[%s3] sm:$0xff]
        %v710 = vld [vmem:[%s3 + $0x8] sm:$0xff]
        %v711 = vld [vmem:[#allocation4] sm:$0xff]
        %v712 = vld [vmem:[#allocation4 + $0x8] sm:$0xff]
        %v713 = vld [vmem:[#allocation4 + $0x10] sm:$0xff]
        %v714 = vld [vmem:[#allocation4 + $0x18] sm:$0xff]
        %v715 = vld [vmem:[#allocation4 + $0x20] sm:$0xff]
        %v716 = vld [vmem:[#allocation4 + $0x28] sm:$0xff]
        %v717 = vld [vmem:[#allocation4 + $0x30] sm:$0xff]
        %v718 = vld [vmem:[#allocation4 + $0x38] sm:$0xff]
        %v719 = vld [vmem:[#allocation4 + $0x40] sm:$0xff]
        %v720 = vld [vmem:[#allocation4 + $0x48] sm:$0xff]
        %v721 = vld [vmem:[#allocation4 + $0x50] sm:$0xff]
        %v722 = vld [vmem:[#allocation4 + $0x58] sm:$0xff]
        %v723 = vld [vmem:[%s4] sm:$0xff]
        %v724 = vld [vmem:[%s4 + $0x8] sm:$0xff]
        %726 = vset.pattern.permute.xlu0 0
        %727 = vperm.xlu0 %726, %v723
        %v728 = vpop.permute.xlu0 %727
        %731 = vset.pattern.permute.xlu0 0
        %732 = vperm.xlu0 %731, %v724
        %v733 = vpop.permute.xlu0 %732
        %vm735 = vcmask 261120
        %v737 = vsel %vm735, %v709, 0
        %v740 = vsel %vm735, %v710, 0
        %742 = vmatprep.subr.mxu0 %v712
        %743 = vmatpush1.msra.mxu0 %v711
        %744 = vmatprep.subr.mxu0 %v715
        %745 = vmatpush1.msra.mxu0 %v714
        %746 = vmatprep.subr.mxu0 %v718
        %747 = vmatpush1.msra.mxu0 %v717
        %748 = vmatprep.subr.mxu0 %v721
        %749 = vmatpush1.msra.mxu0 %v720
        %750 = vmatprep.subr.mxu0 0.0
        %751 = vmatpush1.msra.mxu0 0.0
        %752 = vmatprep.subr.mxu0 0.0
        %753 = vmatpush1.msra.mxu0 0.0
        %754 = vmatprep.subr.mxu0 0.0
        %755 = vmatpush1.msra.mxu0 0.0
        %756 = vmatprep.subr.mxu0 0.0
        %757 = vmatpush1.msra.mxu0 0.0
        %758 = vmatprep.subr.mxu0 0.0
        %759 = vmatpush1.msra.mxu0 0.0
        %760 = vmatprep.subr.mxu0 0.0
        %761 = vmatpush1.msra.mxu0 0.0
        %762 = vmatprep.subr.mxu0 0.0
        %763 = vmatpush1.msra.mxu0 0.0
        %764 = vmatprep.subr.mxu0 0.0
        %765 = vmatpush1.msra.mxu0 0.0
        %766 = vmatprep.subr.mxu0 0.0
        %767 = vmatpush1.msra.mxu0 0.0
        %768 = vmatprep.subr.mxu0 0.0
        %769 = vmatpush1.msra.mxu0 0.0
        %770 = vmatprep.subr.mxu0 0.0
        %771 = vmatpush1.msra.mxu0 0.0
        %772 = vmatprep.subr.mxu0 0.0
        %773 = vmatpush1.msra.mxu0 0.0
        %774 = vmatprep.subr.mxu0 0.0
        %775 = vmatpush1.msra.mxu0 0.0
        %776 = vmatprep.subr.mxu0 0.0
        %777 = vmatpush1.msra.mxu0 0.0
        %778 = vmatprep.subr.mxu0 0.0
        %779 = vmatpush1.msra.mxu0 0.0
        %780 = vmatprep.subr.mxu0 0.0
        %781 = vmatpush1.msra.mxu0 0.0
        %782 = vmatprep.subr.mxu0 0.0
        %783 = vmatpush1.msra.mxu0 0.0
        %784 = vmatprep.subr.mxu0 0.0
        %785 = vmatpush1.msra.mxu0 0.0
        %786 = vmatprep.subr.mxu0 0.0
        %787 = vmatpush1.msra.mxu0 0.0
        %788 = vmatprep.subr.mxu0 0.0
        %789 = vmatpush1.msra.mxu0 0.0
        %790 = vmatprep.subr.mxu0 0.0
        %791 = vmatpush1.msra.mxu0 0.0
        %792 = vmatprep.subr.mxu0 0.0
        %793 = vmatpush1.msra.mxu0 0.0
        %794 = vmatprep.subr.mxu0 0.0
        %795 = vmatpush1.msra.mxu0 0.0
        %796 = vmatprep.subr.mxu0 0.0
        %797 = vmatpush1.msra.mxu0 0.0
        %798 = vmatprep.subr.mxu0 0.0
        %799 = vmatpush1.msra.mxu0 0.0
        %800 = vmatprep.subr.mxu0 0.0
        %801 = vmatpush1.msra.mxu0 0.0
        %802 = vmatprep.subr.mxu0 0.0
        %803 = vmatpush1.msra.mxu0 0.0
        %804 = vmatprep.subr.mxu0 0.0
        %805 = vmatpush1.msra.mxu0 0.0
        %806 = vmatprep.mubr.f32.mxu0 0.0
        %807 = vmatmul.mubr.f32.gmra.mrb[0].mxu0 %v737
        %v808 = vpop.f32.mrb[0].mxu0
        %v809 = vadd.f32 %v728, %v808
        %v810 = vpop.f32.mrb[0].mxu0
        %v811 = vadd.f32 %v728, %v810
        %812 = vmatprep.mubr.f32.mxu0 0.0
        %813 = vmatmul.mubr.f32.gmra.mrb[0].mxu0 %v740
        %v814 = vpop.f32.mrb[0].mxu0
        %v815 = vadd.f32 %v733, %v814
        %v816 = vpop.f32.mrb[0].mxu0
        %v817 = vadd.f32 %v733, %v816
        %818 = vdwg.mxu0
        %819 = vmatprep.subr.mxu0 0.0
        %820 = vmatpush1.msra.mxu0 %v713
        %821 = vmatprep.subr.mxu0 0.0
        %822 = vmatpush1.msra.mxu0 %v716
        %823 = vmatprep.subr.mxu0 0.0
        %824 = vmatpush1.msra.mxu0 %v719
        %825 = vmatprep.subr.mxu0 0.0
        %826 = vmatpush1.msra.mxu0 %v722
        %827 = vmatprep.subr.mxu0 0.0
        %828 = vmatpush1.msra.mxu0 0.0
        %829 = vmatprep.subr.mxu0 0.0
        %830 = vmatpush1.msra.mxu0 0.0
        %831 = vmatprep.subr.mxu0 0.0
        %832 = vmatpush1.msra.mxu0 0.0
        %833 = vmatprep.subr.mxu0 0.0
        %834 = vmatpush1.msra.mxu0 0.0
        %835 = vmatprep.subr.mxu0 0.0
        %836 = vmatpush1.msra.mxu0 0.0
        %837 = vmatprep.subr.mxu0 0.0
        %838 = vmatpush1.msra.mxu0 0.0
        %839 = vmatprep.subr.mxu0 0.0
        %840 = vmatpush1.msra.mxu0 0.0
        %841 = vmatprep.subr.mxu0 0.0
        %842 = vmatpush1.msra.mxu0 0.0
        %843 = vmatprep.subr.mxu0 0.0
        %844 = vmatpush1.msra.mxu0 0.0
        %845 = vmatprep.subr.mxu0 0.0
        %846 = vmatpush1.msra.mxu0 0.0
        %847 = vmatprep.subr.mxu0 0.0
        %848 = vmatpush1.msra.mxu0 0.0
        %849 = vmatprep.subr.mxu0 0.0
        %850 = vmatpush1.msra.mxu0 0.0
        %851 = vmatprep.subr.mxu0 0.0
        %852 = vmatpush1.msra.mxu0 0.0
        %853 = vmatprep.subr.mxu0 0.0
        %854 = vmatpush1.msra.mxu0 0.0
        %855 = vmatprep.subr.mxu0 0.0
        %856 = vmatpush1.msra.mxu0 0.0
        %857 = vmatprep.subr.mxu0 0.0
        %858 = vmatpush1.msra.mxu0 0.0
        %859 = vmatprep.subr.mxu0 0.0
        %860 = vmatpush1.msra.mxu0 0.0
        %861 = vmatprep.subr.mxu0 0.0
        %862 = vmatpush1.msra.mxu0 0.0
        %863 = vmatprep.subr.mxu0 0.0
        %864 = vmatpush1.msra.mxu0 0.0
        %865 = vmatprep.subr.mxu0 0.0
        %866 = vmatpush1.msra.mxu0 0.0
        %867 = vmatprep.subr.mxu0 0.0
        %868 = vmatpush1.msra.mxu0 0.0
        %869 = vmatprep.subr.mxu0 0.0
        %870 = vmatpush1.msra.mxu0 0.0
        %871 = vmatprep.subr.mxu0 0.0
        %872 = vmatpush1.msra.mxu0 0.0
        %873 = vmatprep.subr.mxu0 0.0
        %874 = vmatpush1.msra.mxu0 0.0
        %875 = vmatprep.subr.mxu0 0.0
        %876 = vmatpush1.msra.mxu0 0.0
        %877 = vmatprep.subr.mxu0 0.0
        %878 = vmatpush1.msra.mxu0 0.0
        %879 = vmatprep.subr.mxu0 0.0
        %880 = vmatpush1.msra.mxu0 0.0
        %881 = vmatprep.subr.mxu0 0.0
        %882 = vmatpush1.msra.mxu0 0.0
        %883 = vmatprep.mubr.f32.mxu0 0.0
        %884 = vmatmul.mubr.f32.gmra.mrb[0].mxu0 %v737
        %v885 = vpop.f32.mrb[0].mxu0
        %v886 = vadd.f32 %v728, %v885
        %v887 = vpop.f32.mrb[0].mxu0
        %888 = vmatprep.mubr.f32.mxu0 0.0
        %889 = vmatmul.mubr.f32.gmra.mrb[0].mxu0 %v740
        %v890 = vpop.f32.mrb[0].mxu0
        %v891 = vadd.f32 %v733, %v890
        %v892 = vpop.f32.mrb[0].mxu0
        %893 = vdwg.mxu0
        %v894 = vmax.f32 %v809, 0.0
        %v895 = vmax.f32 %v811, 0.0
        %v896 = vmax.f32 %v886, 0.0
        %v897 = vmax.f32 %v815, 0.0
        %v898 = vmax.f32 %v817, 0.0
        %v899 = vmax.f32 %v891, 0.0
        %900 = vst [vmem:[%s267] sm:$0xff] %v894
        %901 = vst [vmem:[%s267 + $0x8] sm:$0xff] %v895
        %902 = vst [vmem:[%s267 + $0x10] sm:$0xff] %v896
        %903 = vst [vmem:[%s267 + $0x18] sm:$0xff] %v897
        %904 = vst [vmem:[%s267 + $0x20] sm:$0xff] %v898
        %905 = vst [vmem:[%s267 + $0x28] sm:$0xff] %v899
        %s906 = sand.u32 %s162, 1
        %s907 = scalar_lea.sflag [#allocation7], %s906
        %s908 = sand.u32 %s162, 1
        %s909 = smul.addr %s908, 48
        %s910 = scalar_lea.vmem [#allocation8], %s909
        // Predicated region
        $region49: #{tpu_custom_call.1} parent=43 // pred_check
          %p911 = pneg %p172
        $region50: #{tpu_custom_call.1} parent=43 // pred_check_branch
          %913 = sbr.rel (%p911) target = $region52
        $region51: #{tpu_custom_call.1} parent=43 // pred_region
          %s915 = ssub.s32 768, 768
          %916 = vsyncadd %s907, %s915
          %s917 = smul.addr %s23, 6
          %s918 = smul.addr %s917, 128
          %s919 = scalar_lea.hbm %s6, %s918
          %s920 = sshll.u32 %s910, 4
          %s921 = int_to_ptr.vmem [resolvable:$true] %s920
          %926 = dma.vmem_to_hbm [thread:$0]  %s921, 768, %s919, %s907, 384, 384, 24
        $region52: #{tpu_custom_call.1} parent=43 // pred_fallthru
          _
      $region44: #{tpu_custom_call.1} parent=5 // pred_fallthru
        _
      %p927 = scmp.le.s32.totalorder 2, %s18
      // Predicated region
      $region53: #{tpu_custom_call.1} parent=5 // pred_check
        %p928 = pneg %p927
      $region54: #{tpu_custom_call.1} parent=5 // pred_check_branch
        %930 = sbr.rel (%p928) target = $region56
      $region55: #{tpu_custom_call.1} parent=5 // pred_region
        %s931 = ssub.s32 %s18, 2
        // Predicated region
        $region57: #{tpu_custom_call.1} parent=55 // pred_check
          %p932 = pneg %p178
        $region58: #{tpu_custom_call.1} parent=55 // pred_check_branch
          %934 = sbr.rel (%p932) target = $region60
        $region59: #{tpu_custom_call.1} parent=55 // pred_region
          %s935 = sand.u32 %s163, 1
          %s936 = scalar_lea.sflag [#allocation7], %s935
          %s937 = sand.u32 %s163, 1
          %s938 = smul.addr %s937, 48
          %s939 = scalar_lea.vmem [#allocation8], %s938
          %940 = dma.done %s936, 768
        $region60: #{tpu_custom_call.1} parent=55 // pred_fallthru
          _
      $region56: #{tpu_custom_call.1} parent=5 // pred_fallthru
        _
    $region6: #{tpu_custom_call.1} parent=1 // loop_footer
      %s22 = sadd.s32 1, %s18
    $region7: #{tpu_custom_call.1} parent=1 // loop_footer_branch
      %17 = sbr.rel target = $region3
    $region8: #{tpu_custom_call.1} parent=1 // loop_exit
      _
    %941 = vsyncpa [#allocation6], 1
    %s942 = scalar_lea.sflag [#allocation6], 1
    %943 = vsyncpa %s942, 1
    %944 = vsyncpa [#allocation7], 1
    %s945 = scalar_lea.sflag [#allocation7], 1
    %946 = vsyncpa %s945, 1

</llo_original>
